<compile_context>
chip_gen: v5e
topology: v5e:2x2
jax: 0.10.0
libtpu: 0.0.40
codegen_flags: <defaults>
</compile_context>

<pallas_src>
from functools import partial

import jax
import jax.numpy as jnp
import numpy as np
from jax.experimental import pallas as pl
from jax.experimental.pallas import tpu as pltpu


def _eca_kernel(w_ref, x_ref, o_ref, *, k_size, inv_hw):
    """One grid step gates `bb` images.

    w_ref : SMEM (k_size,) f32  -- Conv1d(1, 1, k_size, bias=False) taps.
    x_ref : VMEM (bb, c, hw)    -- channels on sublanes, spatial on lanes.
    o_ref : VMEM (bb, c, hw)
    """
    x = x_ref[...]                                          # (bb, c, hw)
    c = x.shape[1]

    # AdaptiveAvgPool2d(1): per-(image, channel) spatial mean (lane reduction),
    # accumulated in f32 regardless of the input dtype.
    mean = jnp.sum(x, axis=2, keepdims=True, dtype=jnp.float32) * inv_hw

    # Conv1d across the channel axis (cross-correlation with zero padding).
    # The operand is a tiny (bb, c, 1) tensor, so the static sublane slices
    # are negligible next to the (bb, c, hw) gating multiply below.
    pad = (k_size - 1) // 2
    mean_p = jnp.pad(mean, ((0, 0), (pad, pad), (0, 0)))    # (bb, c+2*pad, 1)
    acc = w_ref[0] * mean_p[:, 0:c, :]
    for j in range(1, k_size):
        acc = acc + w_ref[j] * mean_p[:, j:j + c, :]        # scalar * (bb,c,1)

    gate = jax.nn.sigmoid(acc).astype(x.dtype)              # (bb, c, 1)
    # Full-block lane-dense store; gate broadcasts across the lane (hw) axis.
    o_ref[...] = x * gate


def eca_attention(x, conv_w, *, target_block_bytes=4 << 20,
                  vmem_limit_bytes=32 << 20):
    """x: (b, c, h, w) NCHW.  conv_w: (k_size,) float32 Conv1d taps."""
    b, c, h, w = x.shape
    hw = h * w
    k_size = int(conv_w.shape[0])
    assert k_size % 2 == 1, "ECA uses an odd conv kernel size"

    xg = x.reshape(b, c, hw)

    # Choose images-per-step so one block stays <= ~4 MiB: keeps the
    # double-buffered in+out footprint well under the 32 MiB scoped VMEM
    # while amortizing the ~0.35 us per-grid-step pipeline overhead.
    per_item = c * hw * x.dtype.itemsize
    bb = 1
    for cand in range(b, 0, -1):
        if b % cand == 0 and cand * per_item <= target_block_bytes:
            bb = cand
            break
    # TODO(synk): for huge single images (c*h*w*itemsize >> VMEM) also tile hw
    # with a two-phase (reduce, then gate) grid; not needed at these shapes.

    kernel = partial(_eca_kernel, k_size=k_size, inv_hw=1.0 / float(hw))

    out = pl.pallas_call(
        kernel,
        out_shape=jax.ShapeDtypeStruct((b, c, hw), x.dtype),
        grid_spec=pltpu.PrefetchScalarGridSpec(
            num_scalar_prefetch=0,
            grid=(b // bb,),
            in_specs=[
                pl.BlockSpec(memory_space=pltpu.MemorySpace.SMEM),  # conv taps
                pl.BlockSpec((bb, c, hw), lambda i: (i, 0, 0)),     # x block
            ],
            out_specs=pl.BlockSpec((bb, c, hw), lambda i: (i, 0, 0)),
        ),
        compiler_params=pltpu.CompilerParams(
            dimension_semantics=("parallel",),
            vmem_limit_bytes=vmem_limit_bytes,
        ),
    )(conv_w, xg)

    return out.reshape(b, c, h, w)


def _reference(x, conv_w):
    """Pure-JAX reference mirroring the PyTorch ECAAttention.forward."""
    b, c, h, w = x.shape
    k = conv_w.shape[0]
    pad = (k - 1) // 2
    y = jnp.mean(x, axis=(2, 3))                            # (b, c)
    yp = jnp.pad(y, ((0, 0), (pad, pad)))
    conv = sum(conv_w[j] * yp[:, j:j + c] for j in range(k))
    gate = jax.nn.sigmoid(conv)[:, :, None, None]
    return x * gate


if __name__ == "__main__":
    # Small shapes consistent with the module: c a multiple of 8 and h*w a
    # multiple of 128 so every vreg is fully dense.
    b, c, h, w = 2, 32, 16, 16
    k_size = 3

    key = jax.random.PRNGKey(0)
    kx, kw = jax.random.split(key)
    x = jax.random.normal(kx, (b, c, h, w), dtype=jnp.float32)
    conv_w = 0.1 * jax.random.normal(kw, (k_size,), dtype=jnp.float32)

    out = jax.block_until_ready(eca_attention(x, conv_w))
    ref = jax.block_until_ready(_reference(x, conv_w))
    np.testing.assert_allclose(np.asarray(out), np.asarray(ref),
                               rtol=1e-5, atol=1e-5)

    print("KERNEL_OK")
</pallas_src>

<mosaic_0001>
module attributes {stable_mosaic.version = 11 : i64} {
  func.func @_eca_kernel(%arg0: i32, %arg1: memref<3xf32, #tpu.memory_space<smem>>, %arg2: memref<2x32x256xf32, #tpu.memory_space<vmem>>, %arg3: memref<2x32x256xf32, #tpu.memory_space<vmem>>) attributes {dimension_semantics = [#tpu.dimension_semantics<parallel>], iteration_bounds = array<i64: 1>, scalar_prefetch = 0 : i64, scratch_operands = 0 : i64, tpu.core_type = #tpu.core_type<tc>, window_params = [{transform_indices = @transform_0, window_bounds = array<i64: 3>}, {transform_indices = @transform_1, window_bounds = array<i64: 2, 32, 256>}, {transform_indices = @transform_2, window_bounds = array<i64: 2, 32, 256>}]} {
    %c0 = arith.constant 0 : index
    %c0_0 = arith.constant 0 : index
    %c0_1 = arith.constant 0 : index
    %0 = vector.load %arg2[%c0, %c0_0, %c0_1] : memref<2x32x256xf32, #tpu.memory_space<vmem>>, vector<2x32x256xf32>
    %cst = arith.constant dense<0.000000e+00> : vector<2x32xf32>
    %1 = vector.multi_reduction <add>, %0, %cst [2] : vector<2x32x256xf32> to vector<2x32xf32>
    %2 = vector.shape_cast %1 : vector<2x32xf32> to vector<2x32x1xf32>
    %cst_2 = arith.constant 3.906250e-03 : f32
    %3 = vector.broadcast %cst_2 : f32 to vector<2x32x1xf32>
    %4 = arith.mulf %2, %3 : vector<2x32x1xf32>
    %c0_i32 = arith.constant 0 : i32
    %5 = arith.sitofp %c0_i32 : i32 to f32
    %6 = vector.broadcast %5 : f32 to vector<2x1x1xf32>
    %7 = tpu.concatenate %6, %4 in 1 : vector<2x1x1xf32>, vector<2x32x1xf32> -> vector<2x33x1xf32>
    %8 = vector.broadcast %5 : f32 to vector<2x1x1xf32>
    %9 = tpu.concatenate %7, %8 in 1 : vector<2x33x1xf32>, vector<2x1x1xf32> -> vector<2x34x1xf32>
    %c0_3 = arith.constant 0 : index
    %10 = memref.load %arg1[%c0_3] : memref<3xf32, #tpu.memory_space<smem>>
    %11 = vector.extract_strided_slice %9 {offsets = [0, 0, 0], sizes = [2, 32, 1], strides = [1, 1, 1]} : vector<2x34x1xf32> to vector<2x32x1xf32>
    %12 = vector.broadcast %10 : f32 to vector<2x32x1xf32>
    %13 = arith.mulf %12, %11 : vector<2x32x1xf32>
    %c1 = arith.constant 1 : index
    %14 = memref.load %arg1[%c1] : memref<3xf32, #tpu.memory_space<smem>>
    %15 = vector.extract_strided_slice %9 {offsets = [0, 1, 0], sizes = [2, 32, 1], strides = [1, 1, 1]} : vector<2x34x1xf32> to vector<2x32x1xf32>
    %16 = vector.broadcast %14 : f32 to vector<2x32x1xf32>
    %17 = arith.mulf %16, %15 : vector<2x32x1xf32>
    %18 = arith.addf %13, %17 : vector<2x32x1xf32>
    %c2 = arith.constant 2 : index
    %19 = memref.load %arg1[%c2] : memref<3xf32, #tpu.memory_space<smem>>
    %20 = vector.extract_strided_slice %9 {offsets = [0, 2, 0], sizes = [2, 32, 1], strides = [1, 1, 1]} : vector<2x34x1xf32> to vector<2x32x1xf32>
    %21 = vector.broadcast %19 : f32 to vector<2x32x1xf32>
    %22 = arith.mulf %21, %20 : vector<2x32x1xf32>
    %23 = arith.addf %18, %22 : vector<2x32x1xf32>
    %24 = arith.negf %23 : vector<2x32x1xf32>
    %25 = math.exp %24 : vector<2x32x1xf32>
    %cst_4 = arith.constant 1.000000e+00 : f32
    %26 = vector.broadcast %cst_4 : f32 to vector<2x32x1xf32>
    %27 = arith.addf %26, %25 : vector<2x32x1xf32>
    %28 = arith.divf %26, %27 : vector<2x32x1xf32>
    %29 = vector.broadcast %28 : vector<2x32x1xf32> to vector<2x32x256xf32>
    %30 = arith.mulf %0, %29 : vector<2x32x256xf32>
    %c0_5 = arith.constant 0 : index
    %c0_6 = arith.constant 0 : index
    %c0_7 = arith.constant 0 : index
    %31 = vector.load %arg3[%c0_5, %c0_6, %c0_7] : memref<2x32x256xf32, #tpu.memory_space<vmem>>, vector<2x32x256xf32>
    tpu.vector_store %arg3[%c0_5, %c0_6, %c0_7], %30 {strides = array<i32>} : memref<2x32x256xf32, #tpu.memory_space<vmem>>, vector<2x32x256xf32>,
    return
  }
  func.func @transform_0(%arg0: i32) -> i32 {
    %c0_i32 = arith.constant 0 : i32
    %c0_i32_0 = arith.constant 0 : i32
    return %c0_i32 : i32
  }
  func.func @transform_1(%arg0: i32) -> (i32, i32, i32) {
    %c0_i32 = arith.constant 0 : i32
    %c0_i32_0 = arith.constant 0 : i32
    %c0_i32_1 = arith.constant 0 : i32
    return %arg0, %c0_i32, %c0_i32_0 : i32, i32, i32
  }
  func.func @transform_2(%arg0: i32) -> (i32, i32, i32) {
    %c0_i32 = arith.constant 0 : i32
    %c0_i32_0 = arith.constant 0 : i32
    %c0_i32_1 = arith.constant 0 : i32
    return %arg0, %c0_i32, %c0_i32_0 : i32, i32, i32
  }
}

</mosaic_0001>

<llo_original>
// kernel: tpu_custom_call.1
$region0: #{tpu_custom_call.1}
  #allocation0 [shape = 'u32[]', space=smem, size = 0x4, offset = 0x4, fixed_abs, tag = 'smem constant byte address 0x4 - core index']
  #allocation1 [shape = 'u32[72,128]{1,0:T(1,128)}', space=vmem, size = 0x9000, scoped, tag = 'internal scratch']
  %s0 = inlined_call_operand.hbm [shape: f32[3], index: 0, kind: input, shape index: {}]
  %s1 = inlined_call_operand.hbm [shape: f32[2,32,256], index: 1, kind: input, shape index: {}]
  %s2 = inlined_call_operand.hbm [shape: f32[2,32,256], index: 2, kind: output, shape index: {}]
  %s3 = sld [smem:[#allocation0]]
  $region26: #{tpu_custom_call.1} parent=0
    _
  %s5 = ssub.s32 1, %s3
  %s6 = scalar_select 0, %s5, %s3
  $region1: #{tpu_custom_call.1} parent=0
    #allocation2 [shape = 'u8[512]{0}', space=smem, size = 0x200, scoped, tag = 'input window, operand 0, single buffered']
    #allocation3 [shape = 's32[1]{0}', space=sflag, size = 0x4, scoped, tag = 'scoped memory for tpu_custom_call.1']
    #allocation4 [shape = 's32[1]{0}', space=sflag, size = 0x4, scoped, tag = 'scoped memory for tpu_custom_call.1']
    #allocation5 [shape = 's32[1]{0}', space=sflag, size = 0x4, scoped, tag = 'scoped memory for tpu_custom_call.1']
    #allocation6 [shape = 'u8[65536]{0}', space=vmem, size = 0x10000, scoped, tag = 'input window, operand 1, single buffered']
    #allocation7 [shape = 'u8[65536]{0}', space=vmem, size = 0x10000, scoped, tag = 'output window, operand 0, single buffered']
    %7 = vsyncpa [#allocation5], 0
    %8 = vsyncpa [#allocation3], 0
    %9 = vsyncpa [#allocation4], 0
    // Predicated region
    $region2: #{tpu_custom_call.1} parent=1 // pred_check
      _
    $region3: #{tpu_custom_call.1} parent=1 // pred_check_branch
      %11 = sbr.rel (0) target = $region5
    $region4: #{tpu_custom_call.1} parent=1 // pred_region
      %13 = vsyncadd [#allocation5], 0
      %s15 = sshll.u32 %s0, 4
      %s16 = int_to_ptr.hbm [resolvable:$true] %s15
      %18 = dma.hbm_to_smem %s16, 16, [#allocation2], [#allocation5]
    $region5: #{tpu_custom_call.1} parent=1 // pred_fallthru
      _
    // Predicated region
    $region6: #{tpu_custom_call.1} parent=1 // pred_check
      _
    $region7: #{tpu_custom_call.1} parent=1 // pred_check_branch
      %20 = sbr.rel (0) target = $region9
    $region8: #{tpu_custom_call.1} parent=1 // pred_region
      %22 = vsyncadd [#allocation3], 0
      %s23 = sshll.u32 %s1, 4
      %s24 = int_to_ptr.hbm [resolvable:$true] %s23
      %s25 = sshll.u32 [#allocation6], 4
      %s26 = int_to_ptr.vmem [resolvable:$true] %s25
      %31 = dma.hbm_to_vmem [thread:$0]  %s24, 2048, %s26, [#allocation3], 256, 256, 16
    $region9: #{tpu_custom_call.1} parent=1 // pred_fallthru
      _
    // Predicated region
    $region10: #{tpu_custom_call.1} parent=1 // pred_check
      _
    $region11: #{tpu_custom_call.1} parent=1 // pred_check_branch
      %33 = sbr.rel (0) target = $region13
    $region12: #{tpu_custom_call.1} parent=1 // pred_region
      %35 = dma.done [#allocation5], 16
    $region13: #{tpu_custom_call.1} parent=1 // pred_fallthru
      _
    // Predicated region
    $region14: #{tpu_custom_call.1} parent=1 // pred_check
      _
    $region15: #{tpu_custom_call.1} parent=1 // pred_check_branch
      %37 = sbr.rel (0) target = $region17
    $region16: #{tpu_custom_call.1} parent=1 // pred_region
      %39 = dma.done [#allocation3], 2048
    $region17: #{tpu_custom_call.1} parent=1 // pred_fallthru
      _
    %40 = sfence
    %v41 = vld [vmem:[#allocation6] sm:$0xff]
    %v42 = vld [vmem:[#allocation6 + $0x8] sm:$0xff]
    %v43 = vld [vmem:[#allocation6 + $0x10] sm:$0xff]
    %v44 = vld [vmem:[#allocation6 + $0x18] sm:$0xff]
    %v45 = vld [vmem:[#allocation6 + $0x20] sm:$0xff]
    %v46 = vld [vmem:[#allocation6 + $0x28] sm:$0xff]
    %v47 = vld [vmem:[#allocation6 + $0x30] sm:$0xff]
    %v48 = vld [vmem:[#allocation6 + $0x38] sm:$0xff]
    %v49 = vld [vmem:[#allocation6 + $0x40] sm:$0xff]
    %v50 = vld [vmem:[#allocation6 + $0x48] sm:$0xff]
    %v51 = vld [vmem:[#allocation6 + $0x50] sm:$0xff]
    %v52 = vld [vmem:[#allocation6 + $0x58] sm:$0xff]
    %v53 = vld [vmem:[#allocation6 + $0x60] sm:$0xff]
    %v54 = vld [vmem:[#allocation6 + $0x68] sm:$0xff]
    %v55 = vld [vmem:[#allocation6 + $0x70] sm:$0xff]
    %v56 = vld [vmem:[#allocation6 + $0x78] sm:$0xff]
    %v57 = vadd.f32 %v41, %v42
    %58 = vadd.xlane.f32.xlu0 %v57
    %v59 = vpop.xlane.xlu0 %58
    %v60 = vadd.f32 %v43, %v44
    %61 = vadd.xlane.f32.xlu0 %v60
    %v62 = vpop.xlane.xlu0 %61
    %v63 = vadd.f32 %v45, %v46
    %64 = vadd.xlane.f32.xlu0 %v63
    %v65 = vpop.xlane.xlu0 %64
    %v66 = vadd.f32 %v47, %v48
    %67 = vadd.xlane.f32.xlu0 %v66
    %v68 = vpop.xlane.xlu0 %67
    %v69 = vadd.f32 %v49, %v50
    %70 = vadd.xlane.f32.xlu0 %v69
    %v71 = vpop.xlane.xlu0 %70
    %v72 = vadd.f32 %v51, %v52
    %73 = vadd.xlane.f32.xlu0 %v72
    %v74 = vpop.xlane.xlu0 %73
    %v75 = vadd.f32 %v53, %v54
    %76 = vadd.xlane.f32.xlu0 %v75
    %v77 = vpop.xlane.xlu0 %76
    %v78 = vadd.f32 %v55, %v56
    %79 = vadd.xlane.f32.xlu0 %v78
    %v80 = vpop.xlane.xlu0 %79
    %v81 = vmul.f32 %v59, 0.00390625
    %v82 = vmul.f32 %v62, 0.00390625
    %v83 = vmul.f32 %v65, 0.00390625
    %v84 = vmul.f32 %v68, 0.00390625
    %v85 = vmul.f32 %v71, 0.00390625
    %v86 = vmul.f32 %v74, 0.00390625
    %v87 = vmul.f32 %v77, 0.00390625
    %v88 = vmul.f32 %v80, 0.00390625
    %vm97 = vcmask 1040384
    %v98 = vrot.slane %v81, 7
    %v99 = vrot.slane %v82, 7
    %v100 = vsel %vm97, %v98, %v99
    %v101 = vrot.slane %v83, 7
    %v102 = vsel %vm97, %v99, %v101
    %v103 = vrot.slane %v84, 7
    %v104 = vsel %vm97, %v101, %v103
    %v105 = vrot.slane %v85, 7
    %v106 = vrot.slane %v86, 7
    %v107 = vsel %vm97, %v105, %v106
    %v108 = vrot.slane %v87, 7
    %v109 = vsel %vm97, %v106, %v108
    %v110 = vrot.slane %v88, 7
    %v111 = vsel %vm97, %v108, %v110
    %v122 = vsel %vm97, 0.0, %v98
    %v123 = vsel %vm97, 0.0, %v105
    %v124 = vsel %vm97, %v103, 0.0
    %v125 = vsel %vm97, %v110, 0.0
    %s126 = sld [smem:[#allocation2]]
    %v127 = vstv %s126
    %v128 = vmul.f32 %v127, %v122
    %v129 = vmul.f32 %v127, %v100
    %v130 = vmul.f32 %v127, %v102
    %v131 = vmul.f32 %v127, %v104
    %v132 = vmul.f32 %v127, %v123
    %v133 = vmul.f32 %v127, %v107
    %v134 = vmul.f32 %v127, %v109
    %v135 = vmul.f32 %v127, %v111
    %s136 = sld [smem:[#allocation2 + $0x1]]
    %v137 = vstv %s136
    %v138 = vmul.f32 %v137, %v122
    %v139 = vmul.f32 %v137, %v100
    %v140 = vmul.f32 %v137, %v102
    %v141 = vmul.f32 %v137, %v104
    %v142 = vmul.f32 %v137, %v124
    %v143 = vmul.f32 %v137, %v123
    %v144 = vmul.f32 %v137, %v107
    %v145 = vmul.f32 %v137, %v109
    %v146 = vmul.f32 %v137, %v111
    %v147 = vmul.f32 %v137, %v125
    %vm158 = vcmask 1046528
    %v159 = vrot.slane %v138, 1
    %v160 = vrot.slane %v139, 1
    %v161 = vsel %vm158, %v159, %v160
    %v162 = vrot.slane %v140, 1
    %v163 = vsel %vm158, %v160, %v162
    %v164 = vrot.slane %v141, 1
    %v165 = vsel %vm158, %v162, %v164
    %v166 = vrot.slane %v142, 1
    %v167 = vsel %vm158, %v164, %v166
    %v168 = vrot.slane %v143, 1
    %v169 = vrot.slane %v144, 1
    %v170 = vsel %vm158, %v168, %v169
    %v171 = vrot.slane %v145, 1
    %v172 = vsel %vm158, %v169, %v171
    %v173 = vrot.slane %v146, 1
    %v174 = vsel %vm158, %v171, %v173
    %v175 = vrot.slane %v147, 1
    %v176 = vsel %vm158, %v173, %v175
    %v185 = vadd.f32 %v128, %v161
    %v186 = vadd.f32 %v129, %v163
    %v187 = vadd.f32 %v130, %v165
    %v188 = vadd.f32 %v131, %v167
    %v189 = vadd.f32 %v132, %v170
    %v190 = vadd.f32 %v133, %v172
    %v191 = vadd.f32 %v134, %v174
    %v192 = vadd.f32 %v135, %v176
    %s193 = sld [smem:[#allocation2 + $0x2]]
    %v194 = vstv %s193
    %v195 = vmul.f32 %v194, %v122
    %v196 = vmul.f32 %v194, %v100
    %v197 = vmul.f32 %v194, %v102
    %v198 = vmul.f32 %v194, %v104
    %v199 = vmul.f32 %v194, %v124
    %v200 = vmul.f32 %v194, %v123
    %v201 = vmul.f32 %v194, %v107
    %v202 = vmul.f32 %v194, %v109
    %v203 = vmul.f32 %v194, %v111
    %v204 = vmul.f32 %v194, %v125
    %vm215 = vcmask 1045504
    %v216 = vrot.slane %v195, 2
    %v217 = vrot.slane %v196, 2
    %v218 = vsel %vm215, %v216, %v217
    %v219 = vrot.slane %v197, 2
    %v220 = vsel %vm215, %v217, %v219
    %v221 = vrot.slane %v198, 2
    %v222 = vsel %vm215, %v219, %v221
    %v223 = vrot.slane %v199, 2
    %v224 = vsel %vm215, %v221, %v223
    %v225 = vrot.slane %v200, 2
    %v226 = vrot.slane %v201, 2
    %v227 = vsel %vm215, %v225, %v226
    %v228 = vrot.slane %v202, 2
    %v229 = vsel %vm215, %v226, %v228
    %v230 = vrot.slane %v203, 2
    %v231 = vsel %vm215, %v228, %v230
    %v232 = vrot.slane %v204, 2
    %v233 = vsel %vm215, %v230, %v232
    %v242 = vadd.f32 %v185, %v218
    %v243 = vadd.f32 %v186, %v220
    %v244 = vadd.f32 %v187, %v222
    %v245 = vadd.f32 %v188, %v224
    %v246 = vadd.f32 %v189, %v227
    %v247 = vadd.f32 %v190, %v229
    %v248 = vadd.f32 %v191, %v231
    %v249 = vadd.f32 %v192, %v233
    %v250 = vxor.u32 %v242, 2147483648
    %v251 = vxor.u32 %v243, 2147483648
    %v252 = vxor.u32 %v244, 2147483648
    %v253 = vxor.u32 %v245, 2147483648
    %v254 = vxor.u32 %v246, 2147483648
    %v255 = vxor.u32 %v247, 2147483648
    %v256 = vxor.u32 %v248, 2147483648
    %v257 = vxor.u32 %v249, 2147483648
    %v258 = vmul.f32 %v250, 1.442695
    %v259 = vpow.pop %v258
    %v260 = vmul.f32 %v251, 1.442695
    %v261 = vpow.pop %v260
    %v262 = vmul.f32 %v252, 1.442695
    %v263 = vpow.pop %v262
    %v264 = vmul.f32 %v253, 1.442695
    %v265 = vpow.pop %v264
    %v266 = vmul.f32 %v254, 1.442695
    %v267 = vpow.pop %v266
    %v268 = vmul.f32 %v255, 1.442695
    %v269 = vpow.pop %v268
    %v270 = vmul.f32 %v256, 1.442695
    %v271 = vpow.pop %v270
    %v272 = vmul.f32 %v257, 1.442695
    %v273 = vpow.pop %v272
    %v274 = vadd.f32 %v259, 1.0
    %v275 = vadd.f32 %v261, 1.0
    %v276 = vadd.f32 %v263, 1.0
    %v277 = vadd.f32 %v265, 1.0
    %v278 = vadd.f32 %v267, 1.0
    %v279 = vadd.f32 %v269, 1.0
    %v280 = vadd.f32 %v271, 1.0
    %v281 = vadd.f32 %v273, 1.0
    %v282 = vrcp.pop %v274
    %v283 = vmul.f32 %v274, %v282
    %v284 = vsub.f32 1.0, %v283
    %v285 = vmul.f32 %v282, %v284
    %v286 = vadd.f32 %v282, %v285
    %vm287 = vweird.f32 %v274
    %vm288 = vweird.f32 %v282
    %vm289 = vmor %vm287, %vm288
    %v290 = vsel %vm289, %v282, %v286
    %v291 = vand.u32 2147483647, %v274
    %vm292 = vcmp.eq.f32.partialorder %v291, 8.507059e+37
    %v293 = vand.u32 %v274, 2147483648
    %v294 = vor.u32 1.1754944e-38, %v293
    %v295 = vsel %vm292, %v294, %v290
    %v296 = vmul.f32 1.0, %v295
    %v297 = vrcp.pop %v275
    %v298 = vmul.f32 %v275, %v297
    %v299 = vsub.f32 1.0, %v298
    %v300 = vmul.f32 %v297, %v299
    %v301 = vadd.f32 %v297, %v300
    %vm302 = vweird.f32 %v275
    %vm303 = vweird.f32 %v297
    %vm304 = vmor %vm302, %vm303
    %v305 = vsel %vm304, %v297, %v301
    %v306 = vand.u32 2147483647, %v275
    %vm307 = vcmp.eq.f32.partialorder %v306, 8.507059e+37
    %v308 = vand.u32 %v275, 2147483648
    %v309 = vor.u32 1.1754944e-38, %v308
    %v310 = vsel %vm307, %v309, %v305
    %v311 = vmul.f32 1.0, %v310
    %v312 = vrcp.pop %v276
    %v313 = vmul.f32 %v276, %v312
    %v314 = vsub.f32 1.0, %v313
    %v315 = vmul.f32 %v312, %v314
    %v316 = vadd.f32 %v312, %v315
    %vm317 = vweird.f32 %v276
    %vm318 = vweird.f32 %v312
    %vm319 = vmor %vm317, %vm318
    %v320 = vsel %vm319, %v312, %v316
    %v321 = vand.u32 2147483647, %v276
    %vm322 = vcmp.eq.f32.partialorder %v321, 8.507059e+37
    %v323 = vand.u32 %v276, 2147483648
    %v324 = vor.u32 1.1754944e-38, %v323
    %v325 = vsel %vm322, %v324, %v320
    %v326 = vmul.f32 1.0, %v325
    %v327 = vrcp.pop %v277
    %v328 = vmul.f32 %v277, %v327
    %v329 = vsub.f32 1.0, %v328
    %v330 = vmul.f32 %v327, %v329
    %v331 = vadd.f32 %v327, %v330
    %vm332 = vweird.f32 %v277
    %vm333 = vweird.f32 %v327
    %vm334 = vmor %vm332, %vm333
    %v335 = vsel %vm334, %v327, %v331
    %v336 = vand.u32 2147483647, %v277
    %vm337 = vcmp.eq.f32.partialorder %v336, 8.507059e+37
    %v338 = vand.u32 %v277, 2147483648
    %v339 = vor.u32 1.1754944e-38, %v338
    %v340 = vsel %vm337, %v339, %v335
    %v341 = vmul.f32 1.0, %v340
    %v342 = vrcp.pop %v278
    %v343 = vmul.f32 %v278, %v342
    %v344 = vsub.f32 1.0, %v343
    %v345 = vmul.f32 %v342, %v344
    %v346 = vadd.f32 %v342, %v345
    %vm347 = vweird.f32 %v278
    %vm348 = vweird.f32 %v342
    %vm349 = vmor %vm347, %vm348
    %v350 = vsel %vm349, %v342, %v346
    %v351 = vand.u32 2147483647, %v278
    %vm352 = vcmp.eq.f32.partialorder %v351, 8.507059e+37
    %v353 = vand.u32 %v278, 2147483648
    %v354 = vor.u32 1.1754944e-38, %v353
    %v355 = vsel %vm352, %v354, %v350
    %v356 = vmul.f32 1.0, %v355
    %v357 = vrcp.pop %v279
    %v358 = vmul.f32 %v279, %v357
    %v359 = vsub.f32 1.0, %v358
    %v360 = vmul.f32 %v357, %v359
    %v361 = vadd.f32 %v357, %v360
    %vm362 = vweird.f32 %v279
    %vm363 = vweird.f32 %v357
    %vm364 = vmor %vm362, %vm363
    %v365 = vsel %vm364, %v357, %v361
    %v366 = vand.u32 2147483647, %v279
    %vm367 = vcmp.eq.f32.partialorder %v366, 8.507059e+37
    %v368 = vand.u32 %v279, 2147483648
    %v369 = vor.u32 1.1754944e-38, %v368
    %v370 = vsel %vm367, %v369, %v365
    %v371 = vmul.f32 1.0, %v370
    %v372 = vrcp.pop %v280
    %v373 = vmul.f32 %v280, %v372
    %v374 = vsub.f32 1.0, %v373
    %v375 = vmul.f32 %v372, %v374
    %v376 = vadd.f32 %v372, %v375
    %vm377 = vweird.f32 %v280
    %vm378 = vweird.f32 %v372
    %vm379 = vmor %vm377, %vm378
    %v380 = vsel %vm379, %v372, %v376
    %v381 = vand.u32 2147483647, %v280
    %vm382 = vcmp.eq.f32.partialorder %v381, 8.507059e+37
    %v383 = vand.u32 %v280, 2147483648
    %v384 = vor.u32 1.1754944e-38, %v383
    %v385 = vsel %vm382, %v384, %v380
    %v386 = vmul.f32 1.0, %v385
    %v387 = vrcp.pop %v281
    %v388 = vmul.f32 %v281, %v387
    %v389 = vsub.f32 1.0, %v388
    %v390 = vmul.f32 %v387, %v389
    %v391 = vadd.f32 %v387, %v390
    %vm392 = vweird.f32 %v281
    %vm393 = vweird.f32 %v387
    %vm394 = vmor %vm392, %vm393
    %v395 = vsel %vm394, %v387, %v391
    %v396 = vand.u32 2147483647, %v281
    %vm397 = vcmp.eq.f32.partialorder %v396, 8.507059e+37
    %v398 = vand.u32 %v281, 2147483648
    %v399 = vor.u32 1.1754944e-38, %v398
    %v400 = vsel %vm397, %v399, %v395
    %v401 = vmul.f32 1.0, %v400
    %403 = vset.pattern.permute.xlu0 0
    %404 = vperm.xlu0 %403, %v296
    %v405 = vpop.permute.xlu0 %404
    %408 = vset.pattern.permute.xlu0 0
    %409 = vperm.xlu0 %408, %v311
    %v410 = vpop.permute.xlu0 %409
    %413 = vset.pattern.permute.xlu0 0
    %414 = vperm.xlu0 %413, %v326
    %v415 = vpop.permute.xlu0 %414
    %418 = vset.pattern.permute.xlu0 0
    %419 = vperm.xlu0 %418, %v341
    %v420 = vpop.permute.xlu0 %419
    %423 = vset.pattern.permute.xlu0 0
    %424 = vperm.xlu0 %423, %v356
    %v425 = vpop.permute.xlu0 %424
    %428 = vset.pattern.permute.xlu0 0
    %429 = vperm.xlu0 %428, %v371
    %v430 = vpop.permute.xlu0 %429
    %433 = vset.pattern.permute.xlu0 0
    %434 = vperm.xlu0 %433, %v386
    %v435 = vpop.permute.xlu0 %434
    %438 = vset.pattern.permute.xlu0 0
    %439 = vperm.xlu0 %438, %v401
    %v440 = vpop.permute.xlu0 %439
    %v442 = vmul.f32 %v41, %v405
    %v443 = vmul.f32 %v42, %v405
    %v444 = vmul.f32 %v43, %v410
    %v445 = vmul.f32 %v44, %v410
    %v446 = vmul.f32 %v45, %v415
    %v447 = vmul.f32 %v46, %v415
    %v448 = vmul.f32 %v47, %v420
    %v449 = vmul.f32 %v48, %v420
    %v450 = vmul.f32 %v49, %v425
    %v451 = vmul.f32 %v50, %v425
    %v452 = vmul.f32 %v51, %v430
    %v453 = vmul.f32 %v52, %v430
    %v454 = vmul.f32 %v53, %v435
    %v455 = vmul.f32 %v54, %v435
    %v456 = vmul.f32 %v55, %v440
    %v457 = vmul.f32 %v56, %v440
    %458 = vst [vmem:[#allocation7] sm:$0xff] %v442
    %459 = vst [vmem:[#allocation7 + $0x8] sm:$0xff] %v443
    %460 = vst [vmem:[#allocation7 + $0x10] sm:$0xff] %v444
    %461 = vst [vmem:[#allocation7 + $0x18] sm:$0xff] %v445
    %462 = vst [vmem:[#allocation7 + $0x20] sm:$0xff] %v446
    %463 = vst [vmem:[#allocation7 + $0x28] sm:$0xff] %v447
    %464 = vst [vmem:[#allocation7 + $0x30] sm:$0xff] %v448
    %465 = vst [vmem:[#allocation7 + $0x38] sm:$0xff] %v449
    %466 = vst [vmem:[#allocation7 + $0x40] sm:$0xff] %v450
    %467 = vst [vmem:[#allocation7 + $0x48] sm:$0xff] %v451
    %468 = vst [vmem:[#allocation7 + $0x50] sm:$0xff] %v452
    %469 = vst [vmem:[#allocation7 + $0x58] sm:$0xff] %v453
    %470 = vst [vmem:[#allocation7 + $0x60] sm:$0xff] %v454
    %471 = vst [vmem:[#allocation7 + $0x68] sm:$0xff] %v455
    %472 = vst [vmem:[#allocation7 + $0x70] sm:$0xff] %v456
    %473 = vst [vmem:[#allocation7 + $0x78] sm:$0xff] %v457
    // Predicated region
    $region18: #{tpu_custom_call.1} parent=1 // pred_check
      _
    $region19: #{tpu_custom_call.1} parent=1 // pred_check_branch
      %475 = sbr.rel (0) target = $region21
    $region20: #{tpu_custom_call.1} parent=1 // pred_region
      %477 = vsyncadd [#allocation4], 0
      %s478 = sshll.u32 [#allocation7], 4
      %s479 = int_to_ptr.vmem [resolvable:$true] %s478
      %s480 = sshll.u32 %s2, 4
      %s481 = int_to_ptr.hbm [resolvable:$true] %s480
      %486 = dma.vmem_to_hbm [thread:$0]  %s479, 2048, %s481, [#allocation4], 256, 256, 16
    $region21: #{tpu_custom_call.1} parent=1 // pred_fallthru
      _
    // Predicated region
    $region22: #{tpu_custom_call.1} parent=1 // pred_check
      _
    $region23: #{tpu_custom_call.1} parent=1 // pred_check_branch
      %488 = sbr.rel (0) target = $region25
    $region24: #{tpu_custom_call.1} parent=1 // pred_region
      %490 = dma.done [#allocation4], 2048
    $region25: #{tpu_custom_call.1} parent=1 // pred_fallthru
      _
    %491 = vsyncpa [#allocation3], 1
    %492 = vsyncpa [#allocation4], 1
    %493 = vsyncpa [#allocation5], 1

</llo_original>
